<compile_context>
chip_gen: v5e
topology: v5e:2x2
jax: 0.10.0
libtpu: 0.0.40
codegen_flags: <defaults>
</compile_context>

<pallas_src>
import functools

import jax
import jax.numpy as jnp
from jax import lax
from jax.experimental import pallas as pl
from jax.experimental.pallas import tpu as pltpu


# ------------------------------- kernel -------------------------------------
def _clip_loss_kernel(zi_ref, zj_ref, out_ref, logits_acc, sim_acc, *,
                      inv_temp: float, temp: float):
    k = pl.program_id(0)

    @pl.when(k == 0)
    def _init():
        logits_acc[...] = jnp.zeros_like(logits_acc)
        sim_acc[...] = jnp.zeros_like(sim_acc)

    # Feed the MXU in the input dtype (bf16 inputs -> bf16 matmul operands,
    # f32 accumulation); do NOT upcast the operands to f32.
    zi = zi_ref[...]                                   # (B, tk)
    zj = zj_ref[...]                                   # (B, tk)

    # A @ B.T via dot_general contracting the feature dim of both operands
    # (no materialized transpose).
    dn = (((1,), (1,)), ((), ()))

    # Fold 1/temperature into the zi operand: B*tk multiplies per step
    # (B*D total) instead of B^2 on the logits.
    if inv_temp != 1.0:
        zi_l = zi * jnp.array(inv_temp, dtype=zi.dtype)
    else:
        zi_l = zi
    logits_acc[...] += lax.dot_general(zi_l, zj, dn,
                                       preferred_element_type=jnp.float32)

    # sim accumulation: two accumulating MXU passes into ONE f32 accumulator
    # (zi@zi.T + zj@zj.T) -- no separate images_sim / texts_sim temporaries.
    sim_acc[...] += lax.dot_general(zj, zj, dn,
                                    preferred_element_type=jnp.float32)
    sim_acc[...] += lax.dot_general(zi, zi, dn,
                                    preferred_element_type=jnp.float32)

    @pl.when(k == pl.num_programs(0) - 1)
    def _finalize():
        b = logits_acc.shape[0]
        logits = logits_acc[...]                       # (B, B) f32, == zi@zj.T / temp
        sim = sim_acc[...] * (0.5 * temp)              # (B, B) f32

        # Un-normalized softmax numerator of `targets`.  Normalization is
        # folded in AFTER the per-row weighted sum through an EUP reciprocal
        # of the (B,1) row sums -> no materialized BxB `targets`, no BxB
        # divides.
        sim_max = jnp.max(sim, axis=-1, keepdims=True)
        sim_exp = jnp.exp(sim - sim_max)                                # (B, B)
        inv_rowsum = pl.reciprocal(
            jnp.sum(sim_exp, axis=-1, keepdims=True), approx=True)      # (B, 1)

        # Row / column logsumexp of logits (texts / images log-softmax denoms).
        row_max = jnp.max(logits, axis=-1, keepdims=True)
        row_lse = jnp.log(jnp.sum(jnp.exp(logits - row_max), axis=-1,
                                  keepdims=True)) + row_max              # (B, 1)
        col_max = jnp.max(logits, axis=0, keepdims=True)
        col_lse = jnp.log(jnp.sum(jnp.exp(logits - col_max), axis=0,
                                  keepdims=True)) + col_max              # (1, B)

        # sum_i (texts_loss[i] + images_loss[i])
        #   = -sum_{i,j} targets[i,j] * ((logits - row_lse) + (logits - col_lse))[i,j]
        weighted = sim_exp * ((logits - row_lse) + (logits - col_lse))   # (B, B)
        per_row = jnp.sum(weighted, axis=-1, keepdims=True) * inv_rowsum  # (B, 1)
        out_ref[...] = -jnp.sum(per_row, keepdims=True) * (0.5 / b)       # (1, 1)


# ----------------------------- small helpers ---------------------------------
def _pick_block_k(d: int) -> int:
    """Feature-chunk size: full D if small / unaligned, else the largest
    multiple-of-128 divisor of D that is <= 512 (so the K grid can pipeline
    the input DMA behind the MXU work)."""
    if d <= 512 or d % 128 != 0:
        return d
    for tk in range(512, 127, -128):
        if d % tk == 0:
            return tk
    return d


def _default_vmem_limit_bytes() -> int:
    """Raise the scoped-VMEM limit well above the 16/32 MiB defaults; cap at
    ~7/8 of physical VMEM (v7x only has 64 MiB per TensorCore)."""
    try:
        cap = pltpu.get_tpu_info().vmem_capacity_bytes
        return int(cap * 7 // 8)
    except Exception:
        return 56 * 1024 * 1024


# ------------------------------- wrapper --------------------------------------
class CLIPLossPallas:
    """CLIP (SimCLR-style) contrastive loss, fused into one Pallas TPU kernel."""

    def __init__(self, temperature: float = 1.0, block_k: int | None = None,
                 vmem_limit_bytes: int | None = None):
        self.temperature = float(temperature)
        self.block_k = block_k
        self.vmem_limit_bytes = vmem_limit_bytes

    def __call__(self, z_i, z_j):
        assert z_i.ndim == 2 and z_i.shape == z_j.shape, (z_i.shape, z_j.shape)
        b, d = z_i.shape

        tk = self.block_k if self.block_k is not None else _pick_block_k(d)
        if not (tk == d or (tk % 128 == 0 and d % tk == 0)):
            raise ValueError(f"block_k={tk} must equal D={d} or be a "
                             f"multiple-of-128 divisor of D")
        nk = d // tk

        kernel = functools.partial(
            _clip_loss_kernel,
            inv_temp=1.0 / self.temperature,
            temp=self.temperature,
        )

        itemsize = jnp.dtype(z_i.dtype).itemsize
        cost = pl.CostEstimate(
            flops=6 * b * b * d,          # 1x (B,B,D) + 2x (B,B,D) Gram MACs
            transcendentals=3 * b * b,    # exp for targets + row/col lse
            bytes_accessed=2 * b * d * itemsize + 4,
        )

        out = pl.pallas_call(
            kernel,
            out_shape=jax.ShapeDtypeStruct((1, 1), jnp.float32),
            grid=(nk,),
            in_specs=[
                pl.BlockSpec((b, tk), lambda k: (0, k)),
                pl.BlockSpec((b, tk), lambda k: (0, k)),
            ],
            out_specs=pl.BlockSpec((1, 1), lambda k: (0, 0)),
            scratch_shapes=[
                pltpu.VMEM((b, b), jnp.float32),   # logits accumulator
                pltpu.VMEM((b, b), jnp.float32),   # sim accumulator
            ],
            compiler_params=pltpu.CompilerParams(
                dimension_semantics=("arbitrary",),   # K is a reduction axis
                vmem_limit_bytes=(self.vmem_limit_bytes
                                  or _default_vmem_limit_bytes()),
            ),
            cost_estimate=cost,
        )(z_i, z_j)

        # Always return an f32 scalar loss (even for bf16 embeddings).
        return out[0, 0]


# --------------------------- pure-JAX reference ------------------------------
def _clip_loss_ref(z_i, z_j, temperature=1.0):
    logits = (z_i @ z_j.T) / temperature
    images_similarity = z_j @ z_j.T
    texts_similarity = z_i @ z_i.T
    targets = jax.nn.softmax(
        (images_similarity + texts_similarity) / 2 * temperature, axis=-1)
    texts_loss = -(targets * jax.nn.log_softmax(logits, axis=-1)).sum(1)
    images_loss = -(targets.T * jax.nn.log_softmax(logits.T, axis=-1)).sum(1)
    return ((texts_loss + images_loss) / 2.0).mean()


# --------------------------------- main --------------------------------------
if __name__ == "__main__":
    key = jax.random.PRNGKey(0)
    k1, k2, k3, k4 = jax.random.split(key, 4)

    # Tolerances allow for the EUP approximate reciprocal used for the
    # softmax-row normalization (everything else accumulates in f32).
    ATOL = RTOL = 5e-3

    # Case 1: f32 embeddings, default temperature.
    B, D = 8, 32
    z_i = jax.random.normal(k1, (B, D), dtype=jnp.float32)
    z_j = jax.random.normal(k2, (B, D), dtype=jnp.float32)
    loss = jax.block_until_ready(CLIPLossPallas(temperature=1.0)(z_i, z_j))
    ref = _clip_loss_ref(z_i, z_j, temperature=1.0)
    assert loss.dtype == jnp.float32
    assert jnp.allclose(loss, ref, atol=ATOL, rtol=RTOL), (loss, ref)

    # Case 2: non-default temperature (exercises the folded 1/temp scaling).
    loss2 = jax.block_until_ready(CLIPLossPallas(temperature=0.5)(z_i, z_j))
    ref2 = _clip_loss_ref(z_i, z_j, temperature=0.5)
    assert jnp.allclose(loss2, ref2, atol=ATOL, rtol=RTOL), (loss2, ref2)

    # Case 3: bf16 embeddings -> bf16 MXU operands, f32 accumulation;
    # loss is still returned as f32.
    zi_bf = z_i.astype(jnp.bfloat16)
    zj_bf = z_j.astype(jnp.bfloat16)
    loss3 = jax.block_until_ready(CLIPLossPallas(temperature=1.0)(zi_bf, zj_bf))
    ref3 = _clip_loss_ref(zi_bf.astype(jnp.float32), zj_bf.astype(jnp.float32),
                          temperature=1.0)
    assert loss3.dtype == jnp.float32
    assert jnp.allclose(loss3, ref3, atol=2e-2, rtol=2e-2), (loss3, ref3)

    # Case 4: feature-chunked (K-grid) accumulation path, normalized embeddings.
    B2, D2 = 16, 256
    z_i2 = jax.random.normal(k3, (B2, D2), dtype=jnp.float32)
    z_j2 = jax.random.normal(k4, (B2, D2), dtype=jnp.float32)
    z_i2 = z_i2 / jnp.linalg.norm(z_i2, axis=-1, keepdims=True)
    z_j2 = z_j2 / jnp.linalg.norm(z_j2, axis=-1, keepdims=True)
    loss4 = jax.block_until_ready(
        CLIPLossPallas(temperature=0.7, block_k=128)(z_i2, z_j2))
    ref4 = _clip_loss_ref(z_i2, z_j2, temperature=0.7)
    assert jnp.allclose(loss4, ref4, atol=ATOL, rtol=RTOL), (loss4, ref4)

    print("KERNEL_OK")
</pallas_src>

<mosaic_0001>
module attributes {stable_mosaic.version = 11 : i64} {
  func.func @_clip_loss_kernel(%arg0: i32, %arg1: memref<8x32xf32, #tpu.memory_space<vmem>>, %arg2: memref<8x32xf32, #tpu.memory_space<vmem>>, %arg3: memref<1x1xf32, #tpu.memory_space<vmem>>, %arg4: memref<8x8xf32, #tpu.memory_space<vmem>>, %arg5: memref<8x8xf32, #tpu.memory_space<vmem>>) attributes {dimension_semantics = [#tpu.dimension_semantics<arbitrary>], iteration_bounds = array<i64: 1>, scalar_prefetch = 0 : i64, scratch_operands = 2 : i64, tpu.core_type = #tpu.core_type<tc>, window_params = [{transform_indices = @transform_0, window_bounds = array<i64: 8, 32>}, {transform_indices = @transform_1, window_bounds = array<i64: 8, 32>}, {pipeline_mode = #tpu.pipeline_mode<synchronous>, transform_indices = @transform_2, window_bounds = array<i64: 1, 1>}]} {
    %c0_i32 = arith.constant 0 : i32
    %0 = arith.cmpi eq, %arg0, %c0_i32 : i32
    %1 = arith.extui %0 : i1 to i32
    %c0_i32_0 = arith.constant 0 : i32
    %2 = arith.cmpi ne, %1, %c0_i32_0 : i32
    scf.if %2 {
      %cst_20 = arith.constant 0.000000e+00 : f32
      %20 = vector.broadcast %cst_20 : f32 to vector<8x8xf32>
      %c0_21 = arith.constant 0 : index
      %c0_22 = arith.constant 0 : index
      %21 = vector.load %arg4[%c0_21, %c0_22] : memref<8x8xf32, #tpu.memory_space<vmem>>, vector<8x8xf32>
      tpu.vector_store %arg4[%c0_21, %c0_22], %20 {strides = array<i32>} : memref<8x8xf32, #tpu.memory_space<vmem>>, vector<8x8xf32>,
      %cst_23 = arith.constant 0.000000e+00 : f32
      %22 = vector.broadcast %cst_23 : f32 to vector<8x8xf32>
      %c0_24 = arith.constant 0 : index
      %c0_25 = arith.constant 0 : index
      %23 = vector.load %arg5[%c0_24, %c0_25] : memref<8x8xf32, #tpu.memory_space<vmem>>, vector<8x8xf32>
      tpu.vector_store %arg5[%c0_24, %c0_25], %22 {strides = array<i32>} : memref<8x8xf32, #tpu.memory_space<vmem>>, vector<8x8xf32>,
    } else {
    }
    %c0 = arith.constant 0 : index
    %c0_1 = arith.constant 0 : index
    %3 = vector.load %arg1[%c0, %c0_1] : memref<8x32xf32, #tpu.memory_space<vmem>>, vector<8x32xf32>
    %c0_2 = arith.constant 0 : index
    %c0_3 = arith.constant 0 : index
    %4 = vector.load %arg2[%c0_2, %c0_3] : memref<8x32xf32, #tpu.memory_space<vmem>>, vector<8x32xf32>
    %c0_4 = arith.constant 0 : index
    %c0_5 = arith.constant 0 : index
    %5 = vector.load %arg4[%c0_4, %c0_5] : memref<8x8xf32, #tpu.memory_space<vmem>>, vector<8x8xf32>
    %cst = arith.constant dense<0.000000e+00> : vector<8x8xf32>
    %6 = tpu.matmul %3, %4, %cst {dimension_numbers = #tpu.dot_dimension_numbers<[1], [1], [0], [0], [0, 0, 1, 0], [], []>} : vector<8x32xf32>, vector<8x32xf32>, vector<8x8xf32> -> vector<8x8xf32>
    %7 = arith.addf %5, %6 : vector<8x8xf32>
    %c0_6 = arith.constant 0 : index
    %c0_7 = arith.constant 0 : index
    %8 = vector.load %arg4[%c0_6, %c0_7] : memref<8x8xf32, #tpu.memory_space<vmem>>, vector<8x8xf32>
    tpu.vector_store %arg4[%c0_6, %c0_7], %7 {strides = array<i32>} : memref<8x8xf32, #tpu.memory_space<vmem>>, vector<8x8xf32>,
    %c0_8 = arith.constant 0 : index
    %c0_9 = arith.constant 0 : index
    %9 = vector.load %arg5[%c0_8, %c0_9] : memref<8x8xf32, #tpu.memory_space<vmem>>, vector<8x8xf32>
    %cst_10 = arith.constant dense<0.000000e+00> : vector<8x8xf32>
    %10 = tpu.matmul %4, %4, %cst_10 {dimension_numbers = #tpu.dot_dimension_numbers<[1], [1], [0], [0], [0, 0, 1, 0], [], []>} : vector<8x32xf32>, vector<8x32xf32>, vector<8x8xf32> -> vector<8x8xf32>
    %11 = arith.addf %9, %10 : vector<8x8xf32>
    %c0_11 = arith.constant 0 : index
    %c0_12 = arith.constant 0 : index
    %12 = vector.load %arg5[%c0_11, %c0_12] : memref<8x8xf32, #tpu.memory_space<vmem>>, vector<8x8xf32>
    tpu.vector_store %arg5[%c0_11, %c0_12], %11 {strides = array<i32>} : memref<8x8xf32, #tpu.memory_space<vmem>>, vector<8x8xf32>,
    %c0_13 = arith.constant 0 : index
    %c0_14 = arith.constant 0 : index
    %13 = vector.load %arg5[%c0_13, %c0_14] : memref<8x8xf32, #tpu.memory_space<vmem>>, vector<8x8xf32>
    %cst_15 = arith.constant dense<0.000000e+00> : vector<8x8xf32>
    %14 = tpu.matmul %3, %3, %cst_15 {dimension_numbers = #tpu.dot_dimension_numbers<[1], [1], [0], [0], [0, 0, 1, 0], [], []>} : vector<8x32xf32>, vector<8x32xf32>, vector<8x8xf32> -> vector<8x8xf32>
    %15 = arith.addf %13, %14 : vector<8x8xf32>
    %c0_16 = arith.constant 0 : index
    %c0_17 = arith.constant 0 : index
    %16 = vector.load %arg5[%c0_16, %c0_17] : memref<8x8xf32, #tpu.memory_space<vmem>>, vector<8x8xf32>
    tpu.vector_store %arg5[%c0_16, %c0_17], %15 {strides = array<i32>} : memref<8x8xf32, #tpu.memory_space<vmem>>, vector<8x8xf32>,
    %c0_i32_18 = arith.constant 0 : i32
    %17 = arith.cmpi eq, %arg0, %c0_i32_18 : i32
    %18 = arith.extui %17 : i1 to i32
    %c0_i32_19 = arith.constant 0 : i32
    %19 = arith.cmpi ne, %18, %c0_i32_19 : i32
    scf.if %19 {
      %c0_20 = arith.constant 0 : index
      %c0_21 = arith.constant 0 : index
      %20 = vector.load %arg4[%c0_20, %c0_21] : memref<8x8xf32, #tpu.memory_space<vmem>>, vector<8x8xf32>
      %c0_22 = arith.constant 0 : index
      %c0_23 = arith.constant 0 : index
      %21 = vector.load %arg5[%c0_22, %c0_23] : memref<8x8xf32, #tpu.memory_space<vmem>>, vector<8x8xf32>
      %cst_24 = arith.constant 5.000000e-01 : f32
      %22 = vector.broadcast %cst_24 : f32 to vector<8x8xf32>
      %23 = arith.mulf %21, %22 : vector<8x8xf32>
      %cst_25 = arith.constant dense<0xFF800000> : vector<8xf32>
      %24 = vector.multi_reduction <maximumf>, %23, %cst_25 [1] : vector<8x8xf32> to vector<8xf32>
      %25 = vector.shape_cast %24 : vector<8xf32> to vector<8x1xf32>
      %26 = vector.broadcast %25 : vector<8x1xf32> to vector<8x8xf32>
      %27 = arith.subf %23, %26 : vector<8x8xf32>
      %28 = math.exp %27 : vector<8x8xf32>
      %cst_26 = arith.constant dense<0.000000e+00> : vector<8xf32>
      %29 = vector.multi_reduction <add>, %28, %cst_26 [1] : vector<8x8xf32> to vector<8xf32>
      %30 = vector.shape_cast %29 : vector<8xf32> to vector<8x1xf32>
      %31 = tpu.reciprocal %30 {approx = true} : vector<8x1xf32> -> vector<8x1xf32>
      %cst_27 = arith.constant dense<0xFF800000> : vector<8xf32>
      %32 = vector.multi_reduction <maximumf>, %20, %cst_27 [1] : vector<8x8xf32> to vector<8xf32>
      %33 = vector.shape_cast %32 : vector<8xf32> to vector<8x1xf32>
      %34 = vector.broadcast %33 : vector<8x1xf32> to vector<8x8xf32>
      %35 = arith.subf %20, %34 : vector<8x8xf32>
      %36 = math.exp %35 : vector<8x8xf32>
      %cst_28 = arith.constant dense<0.000000e+00> : vector<8xf32>
      %37 = vector.multi_reduction <add>, %36, %cst_28 [1] : vector<8x8xf32> to vector<8xf32>
      %38 = vector.shape_cast %37 : vector<8xf32> to vector<8x1xf32>
      %39 = math.log %38 : vector<8x1xf32>
      %40 = arith.addf %39, %33 : vector<8x1xf32>
      %cst_29 = arith.constant dense<0xFF800000> : vector<8xf32>
      %41 = vector.multi_reduction <maximumf>, %20, %cst_29 [0] : vector<8x8xf32> to vector<8xf32>
      %42 = vector.shape_cast %41 : vector<8xf32> to vector<1x8xf32>
      %43 = vector.broadcast %42 : vector<1x8xf32> to vector<8x8xf32>
      %44 = arith.subf %20, %43 : vector<8x8xf32>
      %45 = math.exp %44 : vector<8x8xf32>
      %cst_30 = arith.constant dense<0.000000e+00> : vector<8xf32>
      %46 = vector.multi_reduction <add>, %45, %cst_30 [0] : vector<8x8xf32> to vector<8xf32>
      %47 = vector.shape_cast %46 : vector<8xf32> to vector<1x8xf32>
      %48 = math.log %47 : vector<1x8xf32>
      %49 = arith.addf %48, %42 : vector<1x8xf32>
      %50 = vector.broadcast %40 : vector<8x1xf32> to vector<8x8xf32>
      %51 = arith.subf %20, %50 : vector<8x8xf32>
      %52 = vector.broadcast %49 : vector<1x8xf32> to vector<8x8xf32>
      %53 = arith.subf %20, %52 : vector<8x8xf32>
      %54 = arith.addf %51, %53 : vector<8x8xf32>
      %55 = arith.mulf %28, %54 : vector<8x8xf32>
      %cst_31 = arith.constant dense<0.000000e+00> : vector<8xf32>
      %56 = vector.multi_reduction <add>, %55, %cst_31 [1] : vector<8x8xf32> to vector<8xf32>
      %57 = vector.shape_cast %56 : vector<8xf32> to vector<8x1xf32>
      %58 = arith.mulf %57, %31 : vector<8x1xf32>
      %59 = vector.shape_cast %58 : vector<8x1xf32> to vector<1x8x1xf32>
      %cst_32 = arith.constant dense<0.000000e+00> : vector<1xf32>
      %60 = vector.multi_reduction <add>, %59, %cst_32 [1, 2] : vector<1x8x1xf32> to vector<1xf32>
      %61 = vector.shape_cast %60 : vector<1xf32> to vector<1x1x1xf32>
      %62 = vector.extract %61[0, 0, 0] : f32 from vector<1x1x1xf32>
      %63 = vector.broadcast %62 : f32 to vector<1x1xf32>
      %cst_33 = arith.constant 0.000000e+00 : f32
      %64 = vector.broadcast %cst_33 : f32 to vector<1x1xf32>
      %65 = arith.subf %64, %63 : vector<1x1xf32>
      %cst_34 = arith.constant 6.250000e-02 : f32
      %66 = vector.broadcast %cst_34 : f32 to vector<1x1xf32>
      %67 = arith.mulf %65, %66 : vector<1x1xf32>
      %c0_35 = arith.constant 0 : index
      %c0_36 = arith.constant 0 : index
      %68 = vector.load %arg3[%c0_35, %c0_36] : memref<1x1xf32, #tpu.memory_space<vmem>>, vector<1x1xf32>
      tpu.vector_store %arg3[%c0_35, %c0_36], %67 {strides = array<i32>} : memref<1x1xf32, #tpu.memory_space<vmem>>, vector<1x1xf32>,
    } else {
    }
    return
  }
  func.func @transform_0(%arg0: i32) -> (i32, i32) {
    %c0_i32 = arith.constant 0 : i32
    %c0_i32_0 = arith.constant 0 : i32
    return %c0_i32, %arg0 : i32, i32
  }
  func.func @transform_1(%arg0: i32) -> (i32, i32) {
    %c0_i32 = arith.constant 0 : i32
    %c0_i32_0 = arith.constant 0 : i32
    return %c0_i32, %arg0 : i32, i32
  }
  func.func @transform_2(%arg0: i32) -> (i32, i32) {
    %c0_i32 = arith.constant 0 : i32
    %c0_i32_0 = arith.constant 0 : i32
    %c0_i32_1 = arith.constant 0 : i32
    return %c0_i32, %c0_i32_0 : i32, i32
  }
}

</mosaic_0001>

<llo_original>
// kernel: tpu_custom_call.1
$region0: #{tpu_custom_call.1}
  #allocation0 [shape = 'u32[]', space=smem, size = 0x4, offset = 0x4, fixed_abs, tag = 'smem constant byte address 0x4 - core index']
  #allocation1 [shape = 'u32[72,128]{1,0:T(1,128)}', space=vmem, size = 0x9000, scoped, tag = 'internal scratch']
  #allocation2 [shape = 'f32[8,8]{1,0:T(8,128)}', space=vmem, size = 0x1000, scoped, tag = 'scratch operand']
  #allocation3 [shape = 'f32[8,8]{1,0:T(8,128)}', space=vmem, size = 0x1000, scoped, tag = 'scratch operand']
  %s0 = inlined_call_operand.hbm [shape: f32[8,32], index: 0, kind: input, shape index: {}]
  %s1 = inlined_call_operand.hbm [shape: f32[8,32], index: 1, kind: input, shape index: {}]
  %s2 = inlined_call_operand.hbm [shape: f32[1,1], index: 2, kind: output, shape index: {}]
  %s3 = sld [smem:[#allocation0]]
  $region34: #{tpu_custom_call.1} parent=0
    _
  %s5 = ssub.s32 1, %s3
  %s6 = scalar_select 0, %s5, %s3
  $region1: #{tpu_custom_call.1} parent=0
    #allocation4 [shape = 'u8[4096]{0}', space=vmem, size = 0x1000, scoped, tag = 'input window, operand 0, single buffered']
    #allocation5 [shape = 's32[1]{0}', space=sflag, size = 0x4, scoped, tag = 'scoped memory for tpu_custom_call.1']
    #allocation6 [shape = 's32[1]{0}', space=sflag, size = 0x4, scoped, tag = 'scoped memory for tpu_custom_call.1']
    #allocation7 [shape = 'u8[4096]{0}', space=vmem, size = 0x1000, scoped, tag = 'input window, operand 1, single buffered']
    #allocation8 [shape = 's32[1]{0}', space=sflag, size = 0x4, scoped, tag = 'scoped memory for tpu_custom_call.1']
    #allocation9 [shape = 'u8[512]{0}', space=vmem, size = 0x400, scoped, tag = 'output window, operand 0, single buffered']
    %7 = vsyncpa [#allocation5], 0
    %8 = vsyncpa [#allocation8], 0
    %9 = vsyncpa [#allocation6], 0
    // Predicated region
    $region2: #{tpu_custom_call.1} parent=1 // pred_check
      _
    $region3: #{tpu_custom_call.1} parent=1 // pred_check_branch
      %11 = sbr.rel (0) target = $region5
    $region4: #{tpu_custom_call.1} parent=1 // pred_region
      %13 = vsyncadd [#allocation5], 0
      %s15 = sshll.u32 %s0, 4
      %s16 = int_to_ptr.hbm [resolvable:$true] %s15
      %s17 = sshll.u32 [#allocation4], 4
      %s18 = int_to_ptr.vmem [resolvable:$true] %s17
      %20 = dma.hbm_to_vmem [thread:$0]  %s16, 128, %s18, [#allocation5]
    $region5: #{tpu_custom_call.1} parent=1 // pred_fallthru
      _
    // Predicated region
    $region6: #{tpu_custom_call.1} parent=1 // pred_check
      _
    $region7: #{tpu_custom_call.1} parent=1 // pred_check_branch
      %22 = sbr.rel (0) target = $region9
    $region8: #{tpu_custom_call.1} parent=1 // pred_region
      %24 = vsyncadd [#allocation8], 0
      %s26 = sshll.u32 %s1, 4
      %s27 = int_to_ptr.hbm [resolvable:$true] %s26
      %s28 = sshll.u32 [#allocation7], 4
      %s29 = int_to_ptr.vmem [resolvable:$true] %s28
      %31 = dma.hbm_to_vmem [thread:$0]  %s27, 128, %s29, [#allocation8]
    $region9: #{tpu_custom_call.1} parent=1 // pred_fallthru
      _
    // Predicated region
    $region10: #{tpu_custom_call.1} parent=1 // pred_check
      _
    $region11: #{tpu_custom_call.1} parent=1 // pred_check_branch
      %33 = sbr.rel (0) target = $region13
    $region12: #{tpu_custom_call.1} parent=1 // pred_region
      %35 = dma.done [#allocation5], 128
    $region13: #{tpu_custom_call.1} parent=1 // pred_fallthru
      _
    // Predicated region
    $region14: #{tpu_custom_call.1} parent=1 // pred_check
      _
    $region15: #{tpu_custom_call.1} parent=1 // pred_check_branch
      %37 = sbr.rel (0) target = $region17
    $region16: #{tpu_custom_call.1} parent=1 // pred_region
      %39 = dma.done [#allocation8], 128
    $region17: #{tpu_custom_call.1} parent=1 // pred_fallthru
      _
    %p40 = scmp.eq.s32.totalorder 0, 0
    // Predicated region
    $region18: #{tpu_custom_call.1} parent=1 // pred_check
      %p41 = pneg %p40
    $region19: #{tpu_custom_call.1} parent=1 // pred_check_branch
      %43 = sbr.rel (%p41) target = $region21
    $region20: #{tpu_custom_call.1} parent=1 // pred_region
      %vm44 = vcmask 64512
      %45 = vst.msk [vmem:[#allocation2] sm:$0xff] %vm44, 0.0
      %46 = vst.msk [vmem:[#allocation3] sm:$0xff] %vm44, 0.0
    $region21: #{tpu_custom_call.1} parent=1 // pred_fallthru
      _
    %v47 = vld [vmem:[#allocation4] sm:$0xff]
    %v48 = vld [vmem:[#allocation7] sm:$0xff]
    %v49 = vld [vmem:[#allocation2] sm:$0xff]
    %vm50 = vcmask 261120
    %v52 = vsel %vm50, %v47, 0
    %v55 = vsel %vm50, %v48, 0
    %57 = vmatpush.xpose.msra.mxu0 0.0
    %58 = vmatpush.xpose.msra.mxu0 0.0
    %59 = vmatpush.xpose.msra.mxu0 0.0
    %60 = vmatpush.xpose.msra.mxu0 0.0
    %61 = vmatpush.xpose.msra.mxu0 0.0
    %62 = vmatpush.xpose.msra.mxu0 0.0
    %63 = vmatpush.xpose.msra.mxu0 0.0
    %64 = vmatpush.xpose.msra.mxu0 0.0
    %65 = vmatpush.xpose.msra.mxu0 0.0
    %66 = vmatpush.xpose.msra.mxu0 0.0
    %67 = vmatpush.xpose.msra.mxu0 0.0
    %68 = vmatpush.xpose.msra.mxu0 0.0
    %69 = vmatpush.xpose.msra.mxu0 0.0
    %70 = vmatpush.xpose.msra.mxu0 0.0
    %71 = vmatpush.xpose.msra.mxu0 0.0
    %72 = vmatpush.xpose.msra.mxu0 %v55
    %73 = vmatmul.f32.gmra.mxu0 %v52
    %v74 = vpop.f32.mrf.mxu0
    %v75 = vadd.f32 0.0, %v74
    %76 = vdwg.mxu0
    %v77 = vadd.f32 %v49, %v75
    %vm78 = vcmask 64512
    %79 = vst.msk [vmem:[#allocation2] sm:$0xff] %vm78, %v77
    %v80 = vld [vmem:[#allocation3] sm:$0xff]
    %81 = vmatpush.xpose.msra.mxu0 0.0
    %82 = vmatpush.xpose.msra.mxu0 0.0
    %83 = vmatpush.xpose.msra.mxu0 0.0
    %84 = vmatpush.xpose.msra.mxu0 0.0
    %85 = vmatpush.xpose.msra.mxu0 0.0
    %86 = vmatpush.xpose.msra.mxu0 0.0
    %87 = vmatpush.xpose.msra.mxu0 0.0
    %88 = vmatpush.xpose.msra.mxu0 0.0
    %89 = vmatpush.xpose.msra.mxu0 0.0
    %90 = vmatpush.xpose.msra.mxu0 0.0
    %91 = vmatpush.xpose.msra.mxu0 0.0
    %92 = vmatpush.xpose.msra.mxu0 0.0
    %93 = vmatpush.xpose.msra.mxu0 0.0
    %94 = vmatpush.xpose.msra.mxu0 0.0
    %95 = vmatpush.xpose.msra.mxu0 0.0
    %96 = vmatpush.xpose.msra.mxu0 %v55
    %97 = vmatmul.f32.gmra.mxu0 %v55
    %v98 = vpop.f32.mrf.mxu0
    %v99 = vadd.f32 0.0, %v98
    %100 = vdwg.mxu0
    %v101 = vadd.f32 %v80, %v99
    %102 = vst.msk [vmem:[#allocation3] sm:$0xff] %vm78, %v101
    %v103 = vld [vmem:[#allocation3] sm:$0xff]
    %104 = vmatpush.xpose.msra.mxu0 0.0
    %105 = vmatpush.xpose.msra.mxu0 0.0
    %106 = vmatpush.xpose.msra.mxu0 0.0
    %107 = vmatpush.xpose.msra.mxu0 0.0
    %108 = vmatpush.xpose.msra.mxu0 0.0
    %109 = vmatpush.xpose.msra.mxu0 0.0
    %110 = vmatpush.xpose.msra.mxu0 0.0
    %111 = vmatpush.xpose.msra.mxu0 0.0
    %112 = vmatpush.xpose.msra.mxu0 0.0
    %113 = vmatpush.xpose.msra.mxu0 0.0
    %114 = vmatpush.xpose.msra.mxu0 0.0
    %115 = vmatpush.xpose.msra.mxu0 0.0
    %116 = vmatpush.xpose.msra.mxu0 0.0
    %117 = vmatpush.xpose.msra.mxu0 0.0
    %118 = vmatpush.xpose.msra.mxu0 0.0
    %119 = vmatpush.xpose.msra.mxu0 %v52
    %120 = vmatmul.f32.gmra.mxu0 %v52
    %v121 = vpop.f32.mrf.mxu0
    %v122 = vadd.f32 0.0, %v121
    %123 = vdwg.mxu0
    %v124 = vadd.f32 %v103, %v122
    %125 = vst.msk [vmem:[#allocation3] sm:$0xff] %vm78, %v124
    // Predicated region
    $region22: #{tpu_custom_call.1} parent=1 // pred_check
      %p126 = pneg %p40
    $region23: #{tpu_custom_call.1} parent=1 // pred_check_branch
      %128 = sbr.rel (%p126) target = $region25
    $region24: #{tpu_custom_call.1} parent=1 // pred_region
      %v129 = vld [vmem:[#allocation2] sm:$0xff]
      %v130 = vld [vmem:[#allocation3] sm:$0xff]
      %v131 = vmul.f32 %v130, 0.5
      %v132 = vsel %vm78, %v131, -inf
      %133 = vmax.xlane.f32.xlu0 %v132
      %v134 = vpop.xlane.xlu0 %133
      %v135 = vsub.f32 %v131, %v134
      %v136 = vmul.f32 %v135, 1.442695
      %v137 = vpow.pop %v136
      %v138 = vsel %vm78, %v137, 0.0
      %139 = vadd.xlane.f32.xlu0 %v138
      %v140 = vpop.xlane.xlu0 %139
      %v141 = vrcp.pop %v140
      %v142 = vsel %vm78, %v129, -inf
      %143 = vmax.xlane.f32.xlu0 %v142
      %v144 = vpop.xlane.xlu0 %143
      %v145 = vsub.f32 %v129, %v144
      %v146 = vmul.f32 %v145, 1.442695
      %v147 = vpow.pop %v146
      %v148 = vsel %vm78, %v147, 0.0
      %149 = vadd.xlane.f32.xlu0 %v148
      %v150 = vpop.xlane.xlu0 %149
      %v151 = vlog2.pop %v150
      %v152 = vmul.f32 %v151, 0.6931472
      %v153 = vadd.f32 %v152, %v144
      %v154 = vrot.slane %v142, 4
      %v155 = vmax.f32 %v142, %v154
      %v156 = vrot.slane %v155, 2
      %v157 = vmax.f32 %v155, %v156
      %v158 = vrot.slane %v157, 1
      %v159 = vmax.f32 %v157, %v158
      %v160 = vsub.f32 %v129, %v159
      %v161 = vmul.f32 %v160, 1.442695
      %v162 = vpow.pop %v161
      %v163 = vsel %vm78, %v162, 0.0
      %v164 = vrot.slane %v163, 4
      %v165 = vadd.f32 %v163, %v164
      %v166 = vrot.slane %v165, 2
      %v167 = vadd.f32 %v165, %v166
      %v168 = vrot.slane %v167, 1
      %v169 = vadd.f32 %v167, %v168
      %v170 = vlog2.pop %v169
      %v171 = vmul.f32 %v170, 0.6931472
      %v172 = vadd.f32 %v171, %v159
      %v173 = vsub.f32 %v129, %v153
      %v174 = vsub.f32 %v129, %v172
      %v175 = vadd.f32 %v173, %v174
      %v176 = vmul.f32 %v137, %v175
      %v177 = vsel %vm78, %v176, 0.0
      %178 = vadd.xlane.f32.xlu0 %v177
      %v179 = vpop.xlane.xlu0 %178
      %v180 = vmul.f32 %v179, %v141
      %vm181 = vcmask 7168
      %v182 = vsel %vm181, %v180, 0.0
      %183 = vadd.xlane.f32.xlu0 %v182
      %v184 = vpop.xlane.xlu0 %183
      %v185 = vrot.slane %v184, 4
      %v186 = vadd.f32 %v184, %v185
      %v187 = vrot.slane %v186, 2
      %v188 = vadd.f32 %v186, %v187
      %v189 = vrot.slane %v188, 1
      %v190 = vadd.f32 %v188, %v189
      %s191 = vtos %v190
      %v192 = vstv %s191
      %v193 = vsub.f32 0.0, %v192
      %v194 = vmul.f32 %v193, 0.0625
      %vm195 = vcmask 0
      %196 = vst.msk [vmem:[#allocation9] sm:$0x1] %vm195, %v194
    $region25: #{tpu_custom_call.1} parent=1 // pred_fallthru
      _
    // Predicated region
    $region26: #{tpu_custom_call.1} parent=1 // pred_check
      _
    $region27: #{tpu_custom_call.1} parent=1 // pred_check_branch
      %198 = sbr.rel (0) target = $region29
    $region28: #{tpu_custom_call.1} parent=1 // pred_region
      %200 = vsyncadd [#allocation6], 0
      %s202 = sshll.u32 [#allocation9], 4
      %s203 = int_to_ptr.vmem [resolvable:$true] %s202
      %s204 = sshll.u32 %s2, 4
      %s205 = int_to_ptr.hbm [resolvable:$true] %s204
      %207 = dma.vmem_to_hbm [thread:$0]  %s203, 16, %s205, [#allocation6]
    $region29: #{tpu_custom_call.1} parent=1 // pred_fallthru
      _
    // Predicated region
    $region30: #{tpu_custom_call.1} parent=1 // pred_check
      _
    $region31: #{tpu_custom_call.1} parent=1 // pred_check_branch
      %209 = sbr.rel (0) target = $region33
    $region32: #{tpu_custom_call.1} parent=1 // pred_region
      %211 = dma.done [#allocation6], 16
    $region33: #{tpu_custom_call.1} parent=1 // pred_fallthru
      _
    %212 = vsyncpa [#allocation5], 1
    %213 = vsyncpa [#allocation8], 1
    %214 = vsyncpa [#allocation6], 1

</llo_original>
